<compile_context>
chip_gen: v7x
topology: tpu7x:2x2x1
jax: 0.10.0
libtpu: 0.0.40
codegen_flags: <defaults>
</compile_context>

<pallas_src>
import jax
import jax.numpy as jnp
from jax.experimental import pallas as pl
from jax.experimental.pallas import tpu as pltpu


def _round_up(x, m):
    return (x + m - 1) // m * m


def _patch_embed_kernel(patches_ref, w_ref, b_ref, o_ref):
    # patches_ref: (TILE_M, K)  w_ref: (K, E_pad)  b_ref: (1, E_pad) f32
    # o_ref: (TILE_M, E_pad)
    acc = jnp.dot(patches_ref[...], w_ref[...],
                  preferred_element_type=jnp.float32)
    o_ref[...] = (acc + b_ref[...]).astype(o_ref.dtype)


def _vmem_budget_bytes():
    """Generation-aware ceiling for the scoped VMEM limit."""
    phys = None
    try:
        info = pltpu.get_tpu_info()
        phys = int(getattr(info, "vmem_capacity_bytes", 0)) or None
    except Exception:
        phys = None
    if phys is None:
        phys = 64 << 20              # conservative: v7x per-TensorCore VMEM
    # v5e/v6e (128 MiB physical) -> ~96 MiB cap; v7x (64 MiB/TC) -> 48 MiB cap.
    return min(100 << 20, (phys * 3) // 4)


def _choose_tile_m(M, target, min_steps):
    """Largest multiple-of-8 tile <= target that divides M (zero padding and
    >= min_steps grid steps); otherwise a cdiv-based tile with minimal pad."""
    if M % 8 == 0:
        best = None
        for t in range(8, min(target, M) + 1, 8):
            if M % t == 0 and M // t >= min_steps:
                best = t
        if best is not None:
            return best, M
    steps = max(pl.cdiv(M, target), min_steps, 1)
    t = _round_up(pl.cdiv(M, steps), 8)
    return t, _round_up(M, t)


def prepare_patch_embed_params(weight, bias, *, compute_dtype=jnp.bfloat16):
    """One-time parameter prep (hoisted out of the forward path).

    weight: (E, C, p, p) torch Conv2d layout; bias: (E,).
    Returns (w_mat (K, E_pad) compute_dtype, b_row (1, E_pad) f32, E, p).
    """
    E, C, p, p2 = weight.shape
    assert p == p2
    K = C * p * p
    E_pad = _round_up(E, 128)        # lane-dense (unmasked) output stores
    w_mat = weight.reshape(E, K).T.astype(compute_dtype)     # (K, E)
    b_row = bias.astype(jnp.float32).reshape(1, E)
    if E_pad != E:
        w_mat = jnp.pad(w_mat, ((0, 0), (0, E_pad - E)))
        b_row = jnp.pad(b_row, ((0, 0), (0, E_pad - E)))
    return w_mat, b_row, E, p


def patch_embed_forward(x, params, *, out_dtype=None, tile_m=2048):
    """x: (B, C, H, W) NCHW; params from prepare_patch_embed_params.
    Returns (B, N, E), N = (H/p)*(W/p)."""
    w_mat, b_row, E, p = params
    compute_dtype = w_mat.dtype
    out_dtype = compute_dtype if out_dtype is None else out_dtype

    B, C, H, W = x.shape
    assert H % p == 0 and W % p == 0, "Input image size doesn't match model."
    h, w = H // p, W // p
    N = h * w
    K = C * p * p
    assert w_mat.shape[0] == K
    E_pad = w_mat.shape[1]
    M = B * N

    # Patch extraction: cast to the compute dtype first so the relayout moves
    # half the bytes; flatten each patch in (C, p, p) order to match the conv
    # weight's reduction ordering.
    # TODO(synk): fuse this extraction into the kernel (see header TODO).
    patches = (
        x.astype(compute_dtype)
        .reshape(B, C, h, p, w, p)
        .transpose(0, 2, 4, 1, 3, 5)          # (B, h, w, C, p, p)
        .reshape(M, K)
    )

    in_bpe = jnp.dtype(compute_dtype).itemsize
    out_bpe = jnp.dtype(out_dtype).itemsize
    vmem_cap = _vmem_budget_bytes()
    budget = vmem_cap - (8 << 20)

    # >= 4 grid steps (when M allows) keeps both v7x TensorCores busy under
    # dimension_semantics=("parallel",); the divisor search minimizes padding.
    min_steps = max(1, min(4, M // 8))
    target = int(tile_m)
    while True:
        TILE_M, M_pad = _choose_tile_m(M, target, min_steps)
        vmem_needed = (2 * TILE_M * K * in_bpe          # double-buffered patches
                       + K * E_pad * in_bpe             # resident weight (1 buf)
                       + 2 * TILE_M * E_pad * out_bpe   # double-buffered output
                       + 2 * E_pad * 4)                 # bias
        if vmem_needed <= budget or target <= 64:
            break
        target = max(64, target // 2)

    if M_pad != M:
        patches = jnp.pad(patches, ((0, M_pad - M), (0, 0)))

    vmem_limit = int(min(max(vmem_needed + (8 << 20), 32 << 20), vmem_cap))
    grid = (M_pad // TILE_M,)

    def run(single_buffer_params):
        extra = {}
        if single_buffer_params and hasattr(pl, "Buffered"):
            # Constant index_map -> one resident buffer, no pointless 2nd copy.
            extra = dict(pipeline_mode=pl.Buffered(1))
        in_specs = [
            pl.BlockSpec((TILE_M, K), lambda i: (i, 0)),
            pl.BlockSpec((K, E_pad), lambda i: (0, 0), **extra),
            pl.BlockSpec((1, E_pad), lambda i: (0, 0), **extra),
        ]
        return pl.pallas_call(
            _patch_embed_kernel,
            out_shape=jax.ShapeDtypeStruct((M_pad, E_pad), out_dtype),
            grid=grid,
            in_specs=in_specs,
            out_specs=pl.BlockSpec((TILE_M, E_pad), lambda i: (i, 0)),
            compiler_params=pltpu.CompilerParams(
                dimension_semantics=("parallel",),
                vmem_limit_bytes=vmem_limit,
            ),
            cost_estimate=pl.CostEstimate(
                flops=2 * M_pad * K * E_pad,
                bytes_accessed=(M_pad * K + K * E_pad) * in_bpe
                + M_pad * E_pad * out_bpe,
                transcendentals=0,
            ),
        )(patches, w_mat, b_row)

    try:
        out = run(True)
    except Exception:
        # pl.Buffered(1) rejected on this jax/Mosaic version -> default buffering.
        out = run(False)

    if M_pad != M or E_pad != E:
        out = out[:M, :E]
    return out.reshape(B, N, E)


if __name__ == "__main__":
    # Small shapes consistent with the module:
    # img_size=(16,16), patch_size=4, in_channels=4, embed_dim=32, batch=2
    B, C, H, W = 2, 4, 16, 16
    patch_size = 4
    embed_dim = 32

    key = jax.random.PRNGKey(0)
    kx, kw, kb = jax.random.split(key, 3)

    x = jax.random.normal(kx, (B, C, H, W), dtype=jnp.float32)
    # Deterministic synthetic Conv2d parameters (torch layout: (E, C, p, p)).
    weight = jax.random.normal(kw, (embed_dim, C, patch_size, patch_size),
                               dtype=jnp.float32) * 0.02
    bias = jax.random.normal(kb, (embed_dim,), dtype=jnp.float32) * 0.02

    # One-time parameter prep, hoisted out of the forward path.
    params_bf16 = prepare_patch_embed_params(weight, bias,
                                             compute_dtype=jnp.bfloat16)
    params_f32 = prepare_patch_embed_params(weight, bias,
                                            compute_dtype=jnp.float32)

    # Default path: bf16 compute, bf16 output (halved writeback).
    out_bf16 = jax.block_until_ready(patch_embed_forward(x, params_bf16))
    # f32 compute + f32 output for a tight reference check.
    out_f32 = jax.block_until_ready(
        patch_embed_forward(x, params_f32, out_dtype=jnp.float32))

    # Sanity check against plain-JAX conv reference (same semantics as torch).
    ref = jax.lax.conv_general_dilated(
        x, weight, window_strides=(patch_size, patch_size), padding="VALID",
        dimension_numbers=("NCHW", "OIHW", "NCHW"),
    ) + bias.reshape(1, embed_dim, 1, 1)
    ref = ref.reshape(B, embed_dim, -1).transpose(0, 2, 1)   # (B, N, E)

    N = (H // patch_size) * (W // patch_size)
    assert out_bf16.shape == (B, N, embed_dim)
    assert out_bf16.dtype == jnp.bfloat16
    assert out_f32.shape == (B, N, embed_dim)
    assert jnp.allclose(out_f32, ref, atol=1e-4, rtol=1e-4)
    assert jnp.allclose(out_bf16.astype(jnp.float32), ref, atol=3e-2, rtol=3e-2)

    print("KERNEL_OK")
</pallas_src>

<mosaic_0001>
module attributes {stable_mosaic.version = 11 : i64} {
  func.func @_patch_embed_kernel(%arg0: i32, %arg1: memref<8x64xbf16, #tpu.memory_space<vmem>>, %arg2: memref<64x128xbf16, #tpu.memory_space<vmem>>, %arg3: memref<1x128xf32, #tpu.memory_space<vmem>>, %arg4: memref<8x128xbf16, #tpu.memory_space<vmem>>) attributes {dimension_semantics = [#tpu.dimension_semantics<parallel>], iteration_bounds = array<i64: 4>, scalar_prefetch = 0 : i64, scratch_operands = 0 : i64, tpu.core_type = #tpu.core_type<tc>, window_params = [{transform_indices = @transform_0, window_bounds = array<i64: 8, 64>}, {pipeline_mode = #tpu.pipeline_mode<synchronous>, transform_indices = @transform_1, window_bounds = array<i64: 64, 128>}, {pipeline_mode = #tpu.pipeline_mode<synchronous>, transform_indices = @transform_2, window_bounds = array<i64: 1, 128>}, {transform_indices = @transform_3, window_bounds = array<i64: 8, 128>}]} {
    %c0 = arith.constant 0 : index
    %c0_0 = arith.constant 0 : index
    %0 = vector.load %arg1[%c0, %c0_0] : memref<8x64xbf16, #tpu.memory_space<vmem>>, vector<8x64xbf16>
    %c0_1 = arith.constant 0 : index
    %c0_2 = arith.constant 0 : index
    %1 = vector.load %arg2[%c0_1, %c0_2] : memref<64x128xbf16, #tpu.memory_space<vmem>>, vector<64x128xbf16>
    %cst = arith.constant dense<0.000000e+00> : vector<8x128xf32>
    %2 = tpu.matmul %0, %1, %cst {dimension_numbers = #tpu.dot_dimension_numbers<[1], [0], [0], [1], [0, 0, 1, 1], [], []>} : vector<8x64xbf16>, vector<64x128xbf16>, vector<8x128xf32> -> vector<8x128xf32>
    %c0_3 = arith.constant 0 : index
    %c0_4 = arith.constant 0 : index
    %3 = vector.load %arg3[%c0_3, %c0_4] : memref<1x128xf32, #tpu.memory_space<vmem>>, vector<1x128xf32>
    %4 = vector.broadcast %3 : vector<1x128xf32> to vector<8x128xf32>
    %5 = arith.addf %2, %4 : vector<8x128xf32>
    %6 = arith.truncf %5 : vector<8x128xf32> to vector<8x128xbf16>
    %c0_5 = arith.constant 0 : index
    %c0_6 = arith.constant 0 : index
    %7 = vector.load %arg4[%c0_5, %c0_6] : memref<8x128xbf16, #tpu.memory_space<vmem>>, vector<8x128xbf16>
    tpu.vector_store %arg4[%c0_5, %c0_6], %6 {strides = array<i32>} : memref<8x128xbf16, #tpu.memory_space<vmem>>, vector<8x128xbf16>,
    return
  }
  func.func @transform_0(%arg0: i32) -> (i32, i32) {
    %c0_i32 = arith.constant 0 : i32
    %c0_i32_0 = arith.constant 0 : i32
    return %arg0, %c0_i32 : i32, i32
  }
  func.func @transform_1(%arg0: i32) -> (i32, i32) {
    %c0_i32 = arith.constant 0 : i32
    %c0_i32_0 = arith.constant 0 : i32
    %c0_i32_1 = arith.constant 0 : i32
    return %c0_i32, %c0_i32_0 : i32, i32
  }
  func.func @transform_2(%arg0: i32) -> (i32, i32) {
    %c0_i32 = arith.constant 0 : i32
    %c0_i32_0 = arith.constant 0 : i32
    %c0_i32_1 = arith.constant 0 : i32
    return %c0_i32, %c0_i32_0 : i32, i32
  }
  func.func @transform_3(%arg0: i32) -> (i32, i32) {
    %c0_i32 = arith.constant 0 : i32
    %c0_i32_0 = arith.constant 0 : i32
    return %arg0, %c0_i32 : i32, i32
  }
}

module attributes {stable_mosaic.version = 11 : i64} {
  func.func @_patch_embed_kernel(%arg0: i32, %arg1: memref<8x64xbf16, #tpu.memory_space<vmem>>, %arg2: memref<64x128xbf16, #tpu.memory_space<vmem>>, %arg3: memref<1x128xf32, #tpu.memory_space<vmem>>, %arg4: memref<8x128xbf16, #tpu.memory_space<vmem>>) attributes {dimension_semantics = [#tpu.dimension_semantics<parallel>], iteration_bounds = array<i64: 4>, scalar_prefetch = 0 : i64, scratch_operands = 0 : i64, tpu.core_type = #tpu.core_type<tc>, window_params = [{transform_indices = @transform_0, window_bounds = array<i64: 8, 64>}, {pipeline_mode = #tpu.pipeline_mode<synchronous>, transform_indices = @transform_1, window_bounds = array<i64: 64, 128>}, {pipeline_mode = #tpu.pipeline_mode<synchronous>, transform_indices = @transform_2, window_bounds = array<i64: 1, 128>}, {transform_indices = @transform_3, window_bounds = array<i64: 8, 128>}]} {
    %c0 = arith.constant 0 : index
    %c0_0 = arith.constant 0 : index
    %0 = vector.load %arg1[%c0, %c0_0] : memref<8x64xbf16, #tpu.memory_space<vmem>>, vector<8x64xbf16>
    %c0_1 = arith.constant 0 : index
    %c0_2 = arith.constant 0 : index
    %1 = vector.load %arg2[%c0_1, %c0_2] : memref<64x128xbf16, #tpu.memory_space<vmem>>, vector<64x128xbf16>
    %cst = arith.constant dense<0.000000e+00> : vector<8x128xf32>
    %2 = tpu.matmul %0, %1, %cst {dimension_numbers = #tpu.dot_dimension_numbers<[1], [0], [0], [1], [0, 0, 1, 1], [], []>} : vector<8x64xbf16>, vector<64x128xbf16>, vector<8x128xf32> -> vector<8x128xf32>
    %c0_3 = arith.constant 0 : index
    %c0_4 = arith.constant 0 : index
    %3 = vector.load %arg3[%c0_3, %c0_4] : memref<1x128xf32, #tpu.memory_space<vmem>>, vector<1x128xf32>
    %4 = vector.broadcast %3 : vector<1x128xf32> to vector<8x128xf32>
    %5 = arith.addf %2, %4 : vector<8x128xf32>
    %6 = arith.truncf %5 : vector<8x128xf32> to vector<8x128xbf16>
    %c0_5 = arith.constant 0 : index
    %c0_6 = arith.constant 0 : index
    %7 = vector.load %arg4[%c0_5, %c0_6] : memref<8x128xbf16, #tpu.memory_space<vmem>>, vector<8x128xbf16>
    tpu.vector_store %arg4[%c0_5, %c0_6], %6 {strides = array<i32>} : memref<8x128xbf16, #tpu.memory_space<vmem>>, vector<8x128xbf16>,
    return
  }
  func.func @transform_0(%arg0: i32) -> (i32, i32) {
    %c0_i32 = arith.constant 0 : i32
    %c0_i32_0 = arith.constant 0 : i32
    return %arg0, %c0_i32 : i32, i32
  }
  func.func @transform_1(%arg0: i32) -> (i32, i32) {
    %c0_i32 = arith.constant 0 : i32
    %c0_i32_0 = arith.constant 0 : i32
    %c0_i32_1 = arith.constant 0 : i32
    return %c0_i32, %c0_i32_0 : i32, i32
  }
  func.func @transform_2(%arg0: i32) -> (i32, i32) {
    %c0_i32 = arith.constant 0 : i32
    %c0_i32_0 = arith.constant 0 : i32
    %c0_i32_1 = arith.constant 0 : i32
    return %c0_i32, %c0_i32_0 : i32, i32
  }
  func.func @transform_3(%arg0: i32) -> (i32, i32) {
    %c0_i32 = arith.constant 0 : i32
    %c0_i32_0 = arith.constant 0 : i32
    return %arg0, %c0_i32 : i32, i32
  }
}

</mosaic_0001>

<llo_original>
// kernel: tpu_custom_call.1
$region0: #{tpu_custom_call.1}
  #allocation0 [shape = 'u32[]', space=smem, size = 0x4, offset = 0x4, fixed_abs, tag = 'smem constant byte address 0x4 - core index']
  #allocation1 [shape = 'u32[144,128]{1,0:T(1,128)}', space=vmem, size = 0x12000, scoped, tag = 'internal scratch']
  %s0 = inlined_call_operand.hbm [shape: bf16[32,64], index: 0, kind: input, shape index: {}]
  %s1 = inlined_call_operand.hbm [shape: bf16[64,128], index: 1, kind: input, shape index: {}]
  %s2 = inlined_call_operand.vmem [shape: f32[1,128], index: 2, kind: input, shape index: {}]
  %s3 = inlined_call_operand.hbm [shape: bf16[32,128], index: 3, kind: output, shape index: {}]
  %s4 = sld [smem:[#allocation0]]
  $region53: #{tpu_custom_call.1} parent=0
    _
  %s6 = ssub.s32 1, %s4
  %s7 = scalar_select 0, %s6, %s4
  $region1: #{tpu_custom_call.1} parent=0
    #allocation2 [shape = 'u8[4096]{0}', space=vmem, size = 0x1000, scoped, tag = 'input window, operand 0']
    #allocation3 [shape = 's32[2]{0}', space=sflag, size = 0x8, scoped, tag = 'scoped memory for tpu_custom_call.1']
    #allocation4 [shape = 's32[2]{0}', space=sflag, size = 0x8, scoped, tag = 'scoped memory for tpu_custom_call.1']
    #allocation5 [shape = 'u8[16384]{0}', space=vmem, size = 0x4000, scoped, tag = 'input window, operand 1, single buffered']
    #allocation6 [shape = 's32[1]{0}', space=sflag, size = 0x4, scoped, tag = 'scoped memory for tpu_custom_call.1']
    #allocation7 [shape = 'u8[4096]{0}', space=vmem, size = 0x1000, scoped, tag = 'output window, operand 0']
    %8 = vsyncpa [#allocation3], 0
    %s9 = scalar_lea.sflag [#allocation3], 1
    %10 = vsyncpa %s9, 0
    %11 = vsyncpa [#allocation6], 0
    %12 = vsyncpa [#allocation4], 0
    %s13 = scalar_lea.sflag [#allocation4], 1
    %14 = vsyncpa %s13, 0
    loop: start=0, step=1, limit=6
    $region2: #{tpu_custom_call.1} parent=1 // loop_pre_header
      _
    $region3: #{tpu_custom_call.1} parent=1 // loop_header
      %s16 = sphi 0, %s20
      %p17 = scmp.ge.s32.totalorder %s16, 6
      %s26 = sphi 0, %s28
      %s29 = sphi 0, %s26
      %s30 = sphi 0, %s29
      %s46 = sphi 0, %s30
      %s50 = sphi 0, %s50
      %s52 = sphi 0, %s50
      %s53 = sphi 0, %s52
      %s67 = sphi 0, %s53
      %s71 = sphi 0, %s71
      %s73 = sphi 0, %s71
      %s74 = sphi 0, %s73
      %s88 = sphi 0, %s74
      %s94 = sphi 0, %s96
      %s97 = sphi 0, %s94
      %s98 = sphi 0, %s97
      %s114 = sphi 0, %s98
    $region4: #{tpu_custom_call.1} parent=1 // loop_header_branch
      %19 = sbr.rel (%p17) target = $region8
    $region5: #{tpu_custom_call.1} parent=1 // loop_body
      %s21 = ssub.s32 %s16, 1
      %s22 = ssub.s32 %s16, 2
      %s23 = sadd.s32 %s16, 1
      %s24 = ssub.s32 %s16, %s23
      %p25 = scmp.eq.s32.totalorder %s24, 0
      %s27 = sadd.s32 %s26, 1
      %s28 = scalar_select %p25, %s26, %s27
      %p31 = pneg %p25
      %p32 = scmp.eq.s32.totalorder %s16, 3
      %p33 = por %p31, %p32
      %p34 = scmp.ne.s32.totalorder %s26, %s29
      %p35 = scmp.eq.s32.totalorder %s16, 0
      %p36 = por %p34, %p35
      %p37 = scmp.ne.s32.totalorder %s26, %s29
      %p38 = scmp.eq.s32.totalorder %s21, 3
      %p39 = por %p37, %p38
      %p40 = scmp.ne.s32.totalorder %s29, %s30
      %p41 = scmp.eq.s32.totalorder %s21, 0
      %p42 = por %p40, %p41
      %p43 = scmp.ne.s32.totalorder %s29, %s30
      %p44 = scmp.eq.s32.totalorder %s22, 3
      %p45 = por %p43, %p44
      %p47 = scmp.ne.s32.totalorder %s30, %s46
      %p48 = scmp.eq.s32.totalorder %s22, 0
      %p49 = por %p47, %p48
      %s51 = sadd.s32 %s50, 1
      %p54 = scmp.eq.s32.totalorder %s16, 3
      %p55 = scmp.ne.s32.totalorder %s50, %s52
      %p56 = scmp.eq.s32.totalorder %s16, 0
      %p57 = por %p55, %p56
      %p58 = scmp.ne.s32.totalorder %s50, %s52
      %p59 = scmp.eq.s32.totalorder %s21, 3
      %p60 = por %p58, %p59
      %p61 = scmp.ne.s32.totalorder %s52, %s53
      %p62 = scmp.eq.s32.totalorder %s21, 0
      %p63 = por %p61, %p62
      %p64 = scmp.ne.s32.totalorder %s52, %s53
      %p65 = scmp.eq.s32.totalorder %s22, 3
      %p66 = por %p64, %p65
      %p68 = scmp.ne.s32.totalorder %s53, %s67
      %p69 = scmp.eq.s32.totalorder %s22, 0
      %p70 = por %p68, %p69
      %s72 = sadd.s32 %s71, 1
      %p75 = scmp.eq.s32.totalorder %s16, 3
      %p76 = scmp.ne.s32.totalorder %s71, %s73
      %p77 = scmp.eq.s32.totalorder %s16, 0
      %p78 = por %p76, %p77
      %p79 = scmp.ne.s32.totalorder %s71, %s73
      %p80 = scmp.eq.s32.totalorder %s21, 3
      %p81 = por %p79, %p80
      %p82 = scmp.ne.s32.totalorder %s73, %s74
      %p83 = scmp.eq.s32.totalorder %s21, 0
      %p84 = por %p82, %p83
      %p85 = scmp.ne.s32.totalorder %s73, %s74
      %p86 = scmp.eq.s32.totalorder %s22, 3
      %p87 = por %p85, %p86
      %p89 = scmp.ne.s32.totalorder %s74, %s88
      %p90 = scmp.eq.s32.totalorder %s22, 0
      %p91 = por %p89, %p90
      %s92 = ssub.s32 %s16, %s23
      %p93 = scmp.eq.s32.totalorder %s92, 0
      %s95 = sadd.s32 %s94, 1
      %s96 = scalar_select %p93, %s94, %s95
      %p99 = pneg %p93
      %p100 = scmp.eq.s32.totalorder %s16, 3
      %p101 = por %p99, %p100
      %p102 = scmp.ne.s32.totalorder %s94, %s97
      %p103 = scmp.eq.s32.totalorder %s16, 0
      %p104 = por %p102, %p103
      %p105 = scmp.ne.s32.totalorder %s94, %s97
      %p106 = scmp.eq.s32.totalorder %s21, 3
      %p107 = por %p105, %p106
      %p108 = scmp.ne.s32.totalorder %s97, %s98
      %p109 = scmp.eq.s32.totalorder %s21, 0
      %p110 = por %p108, %p109
      %p111 = scmp.ne.s32.totalorder %s97, %s98
      %p112 = scmp.eq.s32.totalorder %s22, 3
      %p113 = por %p111, %p112
      %p115 = scmp.ne.s32.totalorder %s98, %s114
      %p116 = scmp.eq.s32.totalorder %s22, 0
      %p117 = por %p115, %p116
      %p118 = scmp.le.s32.totalorder 1, %s16
      %p119 = scmp.lt.s32.totalorder %s16, 5
      %p120 = pnand %p118, %p119
      %p121 = pneg %p120
      // Predicated region
      $region9: #{tpu_custom_call.1} parent=5 // pred_check
        _
      $region10: #{tpu_custom_call.1} parent=5 // pred_check_branch
        %123 = sbr.rel (%p120) target = $region12
      $region11: #{tpu_custom_call.1} parent=5 // pred_region
        %s124 = ssub.s32 %s16, 1
        // Predicated region
        $region13: #{tpu_custom_call.1} parent=11 // pred_check
          %p125 = pneg %p63
        $region14: #{tpu_custom_call.1} parent=11 // pred_check_branch
          %127 = sbr.rel (%p125) target = $region16
        $region15: #{tpu_custom_call.1} parent=11 // pred_region
          %s129 = ssub.s32 512, 512
          %130 = vsyncadd [#allocation6], %s129
          %s131 = sshll.u32 [#allocation5], 4
          %s132 = int_to_ptr.vmem [resolvable:$true] %s131
          %137 = dma.hbm_to_vmem [thread:$0]  %s1, 512, %s132, [#allocation6], 64, 64, 4
        $region16: #{tpu_custom_call.1} parent=11 // pred_fallthru
          _
        // Predicated region
        $region17: #{tpu_custom_call.1} parent=11 // pred_check
          %p138 = pneg %p84
        $region18: #{tpu_custom_call.1} parent=11 // pred_check_branch
          %140 = sbr.rel (%p138) target = $region20
        $region19: #{tpu_custom_call.1} parent=11 // pred_region
          _
        $region20: #{tpu_custom_call.1} parent=11 // pred_fallthru
          _
      $region12: #{tpu_custom_call.1} parent=5 // pred_fallthru
        _
      %p141 = scmp.lt.s32.totalorder %s16, 4
      // Predicated region
      $region21: #{tpu_custom_call.1} parent=5 // pred_check
        %p142 = pneg %p141
      $region22: #{tpu_custom_call.1} parent=5 // pred_check_branch
        %144 = sbr.rel (%p142) target = $region24
      $region23: #{tpu_custom_call.1} parent=5 // pred_region
        // Predicated region
        $region25: #{tpu_custom_call.1} parent=23 // pred_check
          %p145 = pneg %p36
        $region26: #{tpu_custom_call.1} parent=23 // pred_check_branch
          %147 = sbr.rel (%p145) target = $region28
        $region27: #{tpu_custom_call.1} parent=23 // pred_region
          %s148 = sand.u32 %s26, 1
          %s149 = scalar_lea.sflag [#allocation3], %s148
          %s150 = sand.u32 %s26, 1
          %s151 = smul.addr %s150, 4
          %s152 = scalar_lea.vmem [#allocation2], %s151
          %s154 = ssub.s32 64, 64
          %155 = vsyncadd %s149, %s154
          %s156 = smul.addr %s16, 64
          %s157 = scalar_lea.hbm %s0, %s156
          %s159 = sshll.u32 %s152, 4
          %s160 = int_to_ptr.vmem [resolvable:$true] %s159
          %162 = dma.hbm_to_vmem [thread:$0]  %s157, 64, %s160, %s149
        $region28: #{tpu_custom_call.1} parent=23 // pred_fallthru
          _
      $region24: #{tpu_custom_call.1} parent=5 // pred_fallthru
        _
      %p163 = scmp.le.s32.totalorder 1, %s16
      %p164 = scmp.lt.s32.totalorder %s16, 5
      %p165 = pnand %p163, %p164
      %p166 = pneg %p165
      // Predicated region
      $region29: #{tpu_custom_call.1} parent=5 // pred_check
        _
      $region30: #{tpu_custom_call.1} parent=5 // pred_check_branch
        %168 = sbr.rel (%p165) target = $region32
      $region31: #{tpu_custom_call.1} parent=5 // pred_region
        %s169 = ssub.s32 %s16, 1
        %s170 = sand.u32 %s29, 1
        %s171 = scalar_lea.sflag [#allocation3], %s170
        %s172 = sand.u32 %s29, 1
        %s173 = smul.addr %s172, 4
        %s174 = scalar_lea.vmem [#allocation2], %s173
        // Predicated region
        $region33: #{tpu_custom_call.1} parent=31 // pred_check
          %p175 = pneg %p42
        $region34: #{tpu_custom_call.1} parent=31 // pred_check_branch
          %177 = sbr.rel (%p175) target = $region36
        $region35: #{tpu_custom_call.1} parent=31 // pred_region
          %178 = dma.done %s171, 64
        $region36: #{tpu_custom_call.1} parent=31 // pred_fallthru
          _
        // Predicated region
        $region37: #{tpu_custom_call.1} parent=31 // pred_check
          %p179 = pneg %p63
        $region38: #{tpu_custom_call.1} parent=31 // pred_check_branch
          %181 = sbr.rel (%p179) target = $region40
        $region39: #{tpu_custom_call.1} parent=31 // pred_region
          %182 = dma.done [#allocation6], 512
        $region40: #{tpu_custom_call.1} parent=31 // pred_fallthru
          _
        %s183 = sand.u32 %s29, 1
        %s184 = scalar_lea.sflag [#allocation3], %s183
        %s185 = sand.u32 %s29, 1
        %s186 = smul.addr %s185, 4
        %s187 = scalar_lea.vmem [#allocation2], %s186
        %p188 = pneg %p42
        %p189 = pneg %p39
        %p190 = pneg %p63
        %p191 = pneg %p60
        %p192 = pneg %p84
        %p193 = pneg %p81
        %p194 = pneg %p110
        %p195 = pneg %p107
        %s196 = sand.u32 %s97, 1
        %s197 = scalar_lea.sflag [#allocation4], %s196
        %s198 = sand.u32 %s97, 1
        %s199 = smul.addr %s198, 4
        %s200 = scalar_lea.vmem [#allocation7], %s199
        %v202 = vld [vmem:[%s174] sm:$0xf]
        %v203 = vld [vmem:[#allocation5] sm:$0xf]
        %v204 = vld [vmem:[#allocation5 + $0x4] sm:$0xf]
        %v205 = vld [vmem:[#allocation5 + $0x8] sm:$0xf]
        %v206 = vld [vmem:[#allocation5 + $0xc] sm:$0xf]
        %v207 = vld [vmem:[#allocation5 + $0x10] sm:$0xf]
        %v208 = vld [vmem:[#allocation5 + $0x14] sm:$0xf]
        %v209 = vld [vmem:[#allocation5 + $0x18] sm:$0xf]
        %v210 = vld [vmem:[#allocation5 + $0x1c] sm:$0xf]
        %v211 = vld [vmem:[%s2] sm:$0x1]
        %v213 = vlaneseq
        %v214 = vshrl.u32 %v213, 7
        %v215 = vsub.s32 0, %v214
        %v216 = vrot.slane %v211, %v215
        %v226 = vunpack.c.l.b16 %v203
        %v227 = vunpack.c.l.b16 %v204
        %v228 = vunpack.c.l.b16 %v205
        %v229 = vunpack.c.l.b16 %v206
        %v230 = vunpack.c.l.b16 %v207
        %v231 = vunpack.c.l.b16 %v208
        %v232 = vunpack.c.l.b16 %v209
        %v233 = vunpack.c.l.b16 %v210
        %v234 = vpack.c.b16 %v227, %v226
        %v235 = vpack.c.b16 %v229, %v228
        %v236 = vpack.c.b16 %v231, %v230
        %v237 = vpack.c.b16 %v233, %v232
        %vm242 = vcmask 523264
        %v244 = vsel %vm242, %v202, 0
        %246 = vmatprep.subr.bf16.mxu0 0
        %247 = vmatpush1.bf16.msra.mxu0 %v234
        %248 = vmatprep.subr.bf16.mxu0 0
        %249 = vmatpush1.bf16.msra.mxu0 %v235
        %250 = vmatprep.subr.bf16.mxu0 0
        %251 = vmatpush1.bf16.msra.mxu0 %v236
        %252 = vmatprep.subr.bf16.mxu0 0
        %253 = vmatpush1.bf16.msra.mxu0 %v237
        %254 = vmatprep.subr.bf16.mxu0 0
        %255 = vmatpush1.bf16.msra.mxu0 0
        %256 = vmatprep.subr.bf16.mxu0 0
        %257 = vmatpush1.bf16.msra.mxu0 0
        %258 = vmatprep.subr.bf16.mxu0 0
        %259 = vmatpush1.bf16.msra.mxu0 0
        %260 = vmatprep.subr.bf16.mxu0 0
        %261 = vmatpush1.bf16.msra.mxu0 0
        %262 = vmatprep.subr.bf16.mxu0 0
        %263 = vmatpush1.bf16.msra.mxu0 0
        %264 = vmatprep.subr.bf16.mxu0 0
        %265 = vmatpush1.bf16.msra.mxu0 0
        %266 = vmatprep.subr.bf16.mxu0 0
        %267 = vmatpush1.bf16.msra.mxu0 0
        %268 = vmatprep.subr.bf16.mxu0 0
        %269 = vmatpush1.bf16.msra.mxu0 0
        %270 = vmatprep.subr.bf16.mxu0 0
        %271 = vmatpush1.bf16.msra.mxu0 0
        %272 = vmatprep.subr.bf16.mxu0 0
        %273 = vmatpush1.bf16.msra.mxu0 0
        %274 = vmatprep.subr.bf16.mxu0 0
        %275 = vmatpush1.bf16.msra.mxu0 0
        %276 = vmatprep.subr.bf16.mxu0 0
        %277 = vmatpush1.bf16.msra.mxu0 0
        %278 = vmatprep.mubr.bf16.mxu0 0
        %279 = vmatmul.mubr.bf16.gmra.mrb[0].mxu0 %v244
        %v280 = vpop.f32.mrb[0].mxu0
        %v281 = vadd.f32 %v216, %v280
        %v282 = vpop.f32.mrb[0].mxu0
        %v283 = vpop.f32.mrb[0].mxu0
        %v284 = vpop.f32.mrb[0].mxu0
        %285 = vdwg.mxu0
        %v286 = vpack.c.bf16 %v281, %v281
        %287 = vst [vmem:[%s200] sm:$0xf] %v286
        %s288 = sand.u32 %s97, 1
        %s289 = scalar_lea.sflag [#allocation4], %s288
        %s290 = sand.u32 %s97, 1
        %s291 = smul.addr %s290, 4
        %s292 = scalar_lea.vmem [#allocation7], %s291
        // Predicated region
        $region41: #{tpu_custom_call.1} parent=31 // pred_check
          %p293 = pneg %p107
        $region42: #{tpu_custom_call.1} parent=31 // pred_check_branch
          %295 = sbr.rel (%p293) target = $region44
        $region43: #{tpu_custom_call.1} parent=31 // pred_region
          %s297 = ssub.s32 64, 64
          %298 = vsyncadd %s289, %s297
          %s299 = smul.addr %s21, 64
          %s300 = scalar_lea.hbm %s3, %s299
          %s302 = sshll.u32 %s292, 4
          %s303 = int_to_ptr.vmem [resolvable:$true] %s302
          %305 = dma.vmem_to_hbm [thread:$0]  %s303, 64, %s300, %s289
        $region44: #{tpu_custom_call.1} parent=31 // pred_fallthru
          _
      $region32: #{tpu_custom_call.1} parent=5 // pred_fallthru
        _
      %p306 = scmp.le.s32.totalorder 2, %s16
      // Predicated region
      $region45: #{tpu_custom_call.1} parent=5 // pred_check
        %p307 = pneg %p306
      $region46: #{tpu_custom_call.1} parent=5 // pred_check_branch
        %309 = sbr.rel (%p307) target = $region48
      $region47: #{tpu_custom_call.1} parent=5 // pred_region
        %s310 = ssub.s32 %s16, 2
        // Predicated region
        $region49: #{tpu_custom_call.1} parent=47 // pred_check
          %p311 = pneg %p113
        $region50: #{tpu_custom_call.1} parent=47 // pred_check_branch
          %313 = sbr.rel (%p311) target = $region52
        $region51: #{tpu_custom_call.1} parent=47 // pred_region
          %s314 = sand.u32 %s98, 1
          %s315 = scalar_lea.sflag [#allocation4], %s314
          %s316 = sand.u32 %s98, 1
          %s317 = smul.addr %s316, 4
          %s318 = scalar_lea.vmem [#allocation7], %s317
          %319 = dma.done %s315, 64
        $region52: #{tpu_custom_call.1} parent=47 // pred_fallthru
          _
      $region48: #{tpu_custom_call.1} parent=5 // pred_fallthru
        _
    $region6: #{tpu_custom_call.1} parent=1 // loop_footer
      %s20 = sadd.s32 1, %s16
    $region7: #{tpu_custom_call.1} parent=1 // loop_footer_branch
      %15 = sbr.rel target = $region3
    $region8: #{tpu_custom_call.1} parent=1 // loop_exit
      _
    %320 = vsyncpa [#allocation3], 1
    %s321 = scalar_lea.sflag [#allocation3], 1
    %322 = vsyncpa %s321, 1
    %323 = vsyncpa [#allocation6], 1
    %324 = vsyncpa [#allocation4], 1
    %s325 = scalar_lea.sflag [#allocation4], 1
    %326 = vsyncpa %s325, 1

// kernel: tpu_custom_call.1
$region0: #{tpu_custom_call.1}
  #allocation0 [shape = 'u32[]', space=smem, size = 0x4, offset = 0x4, fixed_abs, tag = 'smem constant byte address 0x4 - core index']
  #allocation1 [shape = 'u32[144,128]{1,0:T(1,128)}', space=vmem, size = 0x12000, scoped, tag = 'internal scratch']
  %s0 = inlined_call_operand.hbm [shape: bf16[32,64], index: 0, kind: input, shape index: {}]
  %s1 = inlined_call_operand.hbm [shape: bf16[64,128], index: 1, kind: input, shape index: {}]
  %s2 = inlined_call_operand.vmem [shape: f32[1,128], index: 2, kind: input, shape index: {}]
  %s3 = inlined_call_operand.hbm [shape: bf16[32,128], index: 3, kind: output, shape index: {}]
  %s4 = sld [smem:[#allocation0]]
  $region53: #{tpu_custom_call.1} parent=0
    _
  %s6 = ssub.s32 1, %s4
  %s7 = scalar_select 0, %s6, %s4
  $region1: #{tpu_custom_call.1} parent=0
    #allocation2 [shape = 'u8[4096]{0}', space=vmem, size = 0x1000, scoped, tag = 'input window, operand 0']
    #allocation3 [shape = 's32[2]{0}', space=sflag, size = 0x8, scoped, tag = 'scoped memory for tpu_custom_call.1']
    #allocation4 [shape = 's32[2]{0}', space=sflag, size = 0x8, scoped, tag = 'scoped memory for tpu_custom_call.1']
    #allocation5 [shape = 'u8[16384]{0}', space=vmem, size = 0x4000, scoped, tag = 'input window, operand 1, single buffered']
    #allocation6 [shape = 's32[1]{0}', space=sflag, size = 0x4, scoped, tag = 'scoped memory for tpu_custom_call.1']
    #allocation7 [shape = 'u8[4096]{0}', space=vmem, size = 0x1000, scoped, tag = 'output window, operand 0']
    %8 = vsyncpa [#allocation3], 0
    %s9 = scalar_lea.sflag [#allocation3], 1
    %10 = vsyncpa %s9, 0
    %11 = vsyncpa [#allocation6], 0
    %12 = vsyncpa [#allocation4], 0
    %s13 = scalar_lea.sflag [#allocation4], 1
    %14 = vsyncpa %s13, 0
    loop: start=0, step=1, limit=6
    $region2: #{tpu_custom_call.1} parent=1 // loop_pre_header
      _
    $region3: #{tpu_custom_call.1} parent=1 // loop_header
      %s16 = sphi 0, %s20
      %p17 = scmp.ge.s32.totalorder %s16, 6
      %s26 = sphi 0, %s28
      %s29 = sphi 0, %s26
      %s30 = sphi 0, %s29
      %s46 = sphi 0, %s30
      %s50 = sphi 0, %s50
      %s52 = sphi 0, %s50
      %s53 = sphi 0, %s52
      %s67 = sphi 0, %s53
      %s71 = sphi 0, %s71
      %s73 = sphi 0, %s71
      %s74 = sphi 0, %s73
      %s88 = sphi 0, %s74
      %s94 = sphi 0, %s96
      %s97 = sphi 0, %s94
      %s98 = sphi 0, %s97
      %s114 = sphi 0, %s98
    $region4: #{tpu_custom_call.1} parent=1 // loop_header_branch
      %19 = sbr.rel (%p17) target = $region8
    $region5: #{tpu_custom_call.1} parent=1 // loop_body
      %s21 = ssub.s32 %s16, 1
      %s22 = ssub.s32 %s16, 2
      %s23 = sadd.s32 %s16, 1
      %s24 = ssub.s32 %s16, %s23
      %p25 = scmp.eq.s32.totalorder %s24, 0
      %s27 = sadd.s32 %s26, 1
      %s28 = scalar_select %p25, %s26, %s27
      %p31 = pneg %p25
      %p32 = scmp.eq.s32.totalorder %s16, 3
      %p33 = por %p31, %p32
      %p34 = scmp.ne.s32.totalorder %s26, %s29
      %p35 = scmp.eq.s32.totalorder %s16, 0
      %p36 = por %p34, %p35
      %p37 = scmp.ne.s32.totalorder %s26, %s29
      %p38 = scmp.eq.s32.totalorder %s21, 3
      %p39 = por %p37, %p38
      %p40 = scmp.ne.s32.totalorder %s29, %s30
      %p41 = scmp.eq.s32.totalorder %s21, 0
      %p42 = por %p40, %p41
      %p43 = scmp.ne.s32.totalorder %s29, %s30
      %p44 = scmp.eq.s32.totalorder %s22, 3
      %p45 = por %p43, %p44
      %p47 = scmp.ne.s32.totalorder %s30, %s46
      %p48 = scmp.eq.s32.totalorder %s22, 0
      %p49 = por %p47, %p48
      %s51 = sadd.s32 %s50, 1
      %p54 = scmp.eq.s32.totalorder %s16, 3
      %p55 = scmp.ne.s32.totalorder %s50, %s52
      %p56 = scmp.eq.s32.totalorder %s16, 0
      %p57 = por %p55, %p56
      %p58 = scmp.ne.s32.totalorder %s50, %s52
      %p59 = scmp.eq.s32.totalorder %s21, 3
      %p60 = por %p58, %p59
      %p61 = scmp.ne.s32.totalorder %s52, %s53
      %p62 = scmp.eq.s32.totalorder %s21, 0
      %p63 = por %p61, %p62
      %p64 = scmp.ne.s32.totalorder %s52, %s53
      %p65 = scmp.eq.s32.totalorder %s22, 3
      %p66 = por %p64, %p65
      %p68 = scmp.ne.s32.totalorder %s53, %s67
      %p69 = scmp.eq.s32.totalorder %s22, 0
      %p70 = por %p68, %p69
      %s72 = sadd.s32 %s71, 1
      %p75 = scmp.eq.s32.totalorder %s16, 3
      %p76 = scmp.ne.s32.totalorder %s71, %s73
      %p77 = scmp.eq.s32.totalorder %s16, 0
      %p78 = por %p76, %p77
      %p79 = scmp.ne.s32.totalorder %s71, %s73
      %p80 = scmp.eq.s32.totalorder %s21, 3
      %p81 = por %p79, %p80
      %p82 = scmp.ne.s32.totalorder %s73, %s74
      %p83 = scmp.eq.s32.totalorder %s21, 0
      %p84 = por %p82, %p83
      %p85 = scmp.ne.s32.totalorder %s73, %s74
      %p86 = scmp.eq.s32.totalorder %s22, 3
      %p87 = por %p85, %p86
      %p89 = scmp.ne.s32.totalorder %s74, %s88
      %p90 = scmp.eq.s32.totalorder %s22, 0
      %p91 = por %p89, %p90
      %s92 = ssub.s32 %s16, %s23
      %p93 = scmp.eq.s32.totalorder %s92, 0
      %s95 = sadd.s32 %s94, 1
      %s96 = scalar_select %p93, %s94, %s95
      %p99 = pneg %p93
      %p100 = scmp.eq.s32.totalorder %s16, 3
      %p101 = por %p99, %p100
      %p102 = scmp.ne.s32.totalorder %s94, %s97
      %p103 = scmp.eq.s32.totalorder %s16, 0
      %p104 = por %p102, %p103
      %p105 = scmp.ne.s32.totalorder %s94, %s97
      %p106 = scmp.eq.s32.totalorder %s21, 3
      %p107 = por %p105, %p106
      %p108 = scmp.ne.s32.totalorder %s97, %s98
      %p109 = scmp.eq.s32.totalorder %s21, 0
      %p110 = por %p108, %p109
      %p111 = scmp.ne.s32.totalorder %s97, %s98
      %p112 = scmp.eq.s32.totalorder %s22, 3
      %p113 = por %p111, %p112
      %p115 = scmp.ne.s32.totalorder %s98, %s114
      %p116 = scmp.eq.s32.totalorder %s22, 0
      %p117 = por %p115, %p116
      %p118 = scmp.le.s32.totalorder 1, %s16
      %p119 = scmp.lt.s32.totalorder %s16, 5
      %p120 = pnand %p118, %p119
      %p121 = pneg %p120
      // Predicated region
      $region9: #{tpu_custom_call.1} parent=5 // pred_check
        _
      $region10: #{tpu_custom_call.1} parent=5 // pred_check_branch
        %123 = sbr.rel (%p120) target = $region12
      $region11: #{tpu_custom_call.1} parent=5 // pred_region
        %s124 = ssub.s32 %s16, 1
        // Predicated region
        $region13: #{tpu_custom_call.1} parent=11 // pred_check
          %p125 = pneg %p63
        $region14: #{tpu_custom_call.1} parent=11 // pred_check_branch
          %127 = sbr.rel (%p125) target = $region16
        $region15: #{tpu_custom_call.1} parent=11 // pred_region
          %s129 = ssub.s32 512, 512
          %130 = vsyncadd [#allocation6], %s129
          %s131 = sshll.u32 [#allocation5], 4
          %s132 = int_to_ptr.vmem [resolvable:$true] %s131
          %137 = dma.hbm_to_vmem [thread:$0]  %s1, 512, %s132, [#allocation6], 64, 64, 4
        $region16: #{tpu_custom_call.1} parent=11 // pred_fallthru
          _
        // Predicated region
        $region17: #{tpu_custom_call.1} parent=11 // pred_check
          %p138 = pneg %p84
        $region18: #{tpu_custom_call.1} parent=11 // pred_check_branch
          %140 = sbr.rel (%p138) target = $region20
        $region19: #{tpu_custom_call.1} parent=11 // pred_region
          _
        $region20: #{tpu_custom_call.1} parent=11 // pred_fallthru
          _
      $region12: #{tpu_custom_call.1} parent=5 // pred_fallthru
        _
      %p141 = scmp.lt.s32.totalorder %s16, 4
      // Predicated region
      $region21: #{tpu_custom_call.1} parent=5 // pred_check
        %p142 = pneg %p141
      $region22: #{tpu_custom_call.1} parent=5 // pred_check_branch
        %144 = sbr.rel (%p142) target = $region24
      $region23: #{tpu_custom_call.1} parent=5 // pred_region
        // Predicated region
        $region25: #{tpu_custom_call.1} parent=23 // pred_check
          %p145 = pneg %p36
        $region26: #{tpu_custom_call.1} parent=23 // pred_check_branch
          %147 = sbr.rel (%p145) target = $region28
        $region27: #{tpu_custom_call.1} parent=23 // pred_region
          %s148 = sand.u32 %s26, 1
          %s149 = scalar_lea.sflag [#allocation3], %s148
          %s150 = sand.u32 %s26, 1
          %s151 = smul.addr %s150, 4
          %s152 = scalar_lea.vmem [#allocation2], %s151
          %s154 = ssub.s32 64, 64
          %155 = vsyncadd %s149, %s154
          %s156 = smul.addr %s16, 64
          %s157 = scalar_lea.hbm %s0, %s156
          %s159 = sshll.u32 %s152, 4
          %s160 = int_to_ptr.vmem [resolvable:$true] %s159
          %162 = dma.hbm_to_vmem [thread:$0]  %s157, 64, %s160, %s149
        $region28: #{tpu_custom_call.1} parent=23 // pred_fallthru
          _
      $region24: #{tpu_custom_call.1} parent=5 // pred_fallthru
        _
      %p163 = scmp.le.s32.totalorder 1, %s16
      %p164 = scmp.lt.s32.totalorder %s16, 5
      %p165 = pnand %p163, %p164
      %p166 = pneg %p165
      // Predicated region
      $region29: #{tpu_custom_call.1} parent=5 // pred_check
        _
      $region30: #{tpu_custom_call.1} parent=5 // pred_check_branch
        %168 = sbr.rel (%p165) target = $region32
      $region31: #{tpu_custom_call.1} parent=5 // pred_region
        %s169 = ssub.s32 %s16, 1
        %s170 = sand.u32 %s29, 1
        %s171 = scalar_lea.sflag [#allocation3], %s170
        %s172 = sand.u32 %s29, 1
        %s173 = smul.addr %s172, 4
        %s174 = scalar_lea.vmem [#allocation2], %s173
        // Predicated region
        $region33: #{tpu_custom_call.1} parent=31 // pred_check
          %p175 = pneg %p42
        $region34: #{tpu_custom_call.1} parent=31 // pred_check_branch
          %177 = sbr.rel (%p175) target = $region36
        $region35: #{tpu_custom_call.1} parent=31 // pred_region
          %178 = dma.done %s171, 64
        $region36: #{tpu_custom_call.1} parent=31 // pred_fallthru
          _
        // Predicated region
        $region37: #{tpu_custom_call.1} parent=31 // pred_check
          %p179 = pneg %p63
        $region38: #{tpu_custom_call.1} parent=31 // pred_check_branch
          %181 = sbr.rel (%p179) target = $region40
        $region39: #{tpu_custom_call.1} parent=31 // pred_region
          %182 = dma.done [#allocation6], 512
        $region40: #{tpu_custom_call.1} parent=31 // pred_fallthru
          _
        %s183 = sand.u32 %s29, 1
        %s184 = scalar_lea.sflag [#allocation3], %s183
        %s185 = sand.u32 %s29, 1
        %s186 = smul.addr %s185, 4
        %s187 = scalar_lea.vmem [#allocation2], %s186
        %p188 = pneg %p42
        %p189 = pneg %p39
        %p190 = pneg %p63
        %p191 = pneg %p60
        %p192 = pneg %p84
        %p193 = pneg %p81
        %p194 = pneg %p110
        %p195 = pneg %p107
        %s196 = sand.u32 %s97, 1
        %s197 = scalar_lea.sflag [#allocation4], %s196
        %s198 = sand.u32 %s97, 1
        %s199 = smul.addr %s198, 4
        %s200 = scalar_lea.vmem [#allocation7], %s199
        %v202 = vld [vmem:[%s174] sm:$0xf]
        %v203 = vld [vmem:[#allocation5] sm:$0xf]
        %v204 = vld [vmem:[#allocation5 + $0x4] sm:$0xf]
        %v205 = vld [vmem:[#allocation5 + $0x8] sm:$0xf]
        %v206 = vld [vmem:[#allocation5 + $0xc] sm:$0xf]
        %v207 = vld [vmem:[#allocation5 + $0x10] sm:$0xf]
        %v208 = vld [vmem:[#allocation5 + $0x14] sm:$0xf]
        %v209 = vld [vmem:[#allocation5 + $0x18] sm:$0xf]
        %v210 = vld [vmem:[#allocation5 + $0x1c] sm:$0xf]
        %v211 = vld [vmem:[%s2] sm:$0x1]
        %v213 = vlaneseq
        %v214 = vshrl.u32 %v213, 7
        %v215 = vsub.s32 0, %v214
        %v216 = vrot.slane %v211, %v215
        %v226 = vunpack.c.l.b16 %v203
        %v227 = vunpack.c.l.b16 %v204
        %v228 = vunpack.c.l.b16 %v205
        %v229 = vunpack.c.l.b16 %v206
        %v230 = vunpack.c.l.b16 %v207
        %v231 = vunpack.c.l.b16 %v208
        %v232 = vunpack.c.l.b16 %v209
        %v233 = vunpack.c.l.b16 %v210
        %v234 = vpack.c.b16 %v227, %v226
        %v235 = vpack.c.b16 %v229, %v228
        %v236 = vpack.c.b16 %v231, %v230
        %v237 = vpack.c.b16 %v233, %v232
        %vm242 = vcmask 523264
        %v244 = vsel %vm242, %v202, 0
        %246 = vmatprep.subr.bf16.mxu0 0
        %247 = vmatpush1.bf16.msra.mxu0 %v234
        %248 = vmatprep.subr.bf16.mxu0 0
        %249 = vmatpush1.bf16.msra.mxu0 %v235
        %250 = vmatprep.subr.bf16.mxu0 0
        %251 = vmatpush1.bf16.msra.mxu0 %v236
        %252 = vmatprep.subr.bf16.mxu0 0
        %253 = vmatpush1.bf16.msra.mxu0 %v237
        %254 = vmatprep.subr.bf16.mxu0 0
        %255 = vmatpush1.bf16.msra.mxu0 0
        %256 = vmatprep.subr.bf16.mxu0 0
        %257 = vmatpush1.bf16.msra.mxu0 0
        %258 = vmatprep.subr.bf16.mxu0 0
        %259 = vmatpush1.bf16.msra.mxu0 0
        %260 = vmatprep.subr.bf16.mxu0 0
        %261 = vmatpush1.bf16.msra.mxu0 0
        %262 = vmatprep.subr.bf16.mxu0 0
        %263 = vmatpush1.bf16.msra.mxu0 0
        %264 = vmatprep.subr.bf16.mxu0 0
        %265 = vmatpush1.bf16.msra.mxu0 0
        %266 = vmatprep.subr.bf16.mxu0 0
        %267 = vmatpush1.bf16.msra.mxu0 0
        %268 = vmatprep.subr.bf16.mxu0 0
        %269 = vmatpush1.bf16.msra.mxu0 0
        %270 = vmatprep.subr.bf16.mxu0 0
        %271 = vmatpush1.bf16.msra.mxu0 0
        %272 = vmatprep.subr.bf16.mxu0 0
        %273 = vmatpush1.bf16.msra.mxu0 0
        %274 = vmatprep.subr.bf16.mxu0 0
        %275 = vmatpush1.bf16.msra.mxu0 0
        %276 = vmatprep.subr.bf16.mxu0 0
        %277 = vmatpush1.bf16.msra.mxu0 0
        %278 = vmatprep.mubr.bf16.mxu0 0
        %279 = vmatmul.mubr.bf16.gmra.mrb[0].mxu0 %v244
        %v280 = vpop.f32.mrb[0].mxu0
        %v281 = vadd.f32 %v216, %v280
        %v282 = vpop.f32.mrb[0].mxu0
        %v283 = vpop.f32.mrb[0].mxu0
        %v284 = vpop.f32.mrb[0].mxu0
        %285 = vdwg.mxu0
        %v286 = vpack.c.bf16 %v281, %v281
        %287 = vst [vmem:[%s200] sm:$0xf] %v286
        %s288 = sand.u32 %s97, 1
        %s289 = scalar_lea.sflag [#allocation4], %s288
        %s290 = sand.u32 %s97, 1
        %s291 = smul.addr %s290, 4
        %s292 = scalar_lea.vmem [#allocation7], %s291
        // Predicated region
        $region41: #{tpu_custom_call.1} parent=31 // pred_check
          %p293 = pneg %p107
        $region42: #{tpu_custom_call.1} parent=31 // pred_check_branch
          %295 = sbr.rel (%p293) target = $region44
        $region43: #{tpu_custom_call.1} parent=31 // pred_region
          %s297 = ssub.s32 64, 64
          %298 = vsyncadd %s289, %s297
          %s299 = smul.addr %s21, 64
          %s300 = scalar_lea.hbm %s3, %s299
          %s302 = sshll.u32 %s292, 4
          %s303 = int_to_ptr.vmem [resolvable:$true] %s302
          %305 = dma.vmem_to_hbm [thread:$0]  %s303, 64, %s300, %s289
        $region44: #{tpu_custom_call.1} parent=31 // pred_fallthru
          _
      $region32: #{tpu_custom_call.1} parent=5 // pred_fallthru
        _
      %p306 = scmp.le.s32.totalorder 2, %s16
      // Predicated region
      $region45: #{tpu_custom_call.1} parent=5 // pred_check
        %p307 = pneg %p306
      $region46: #{tpu_custom_call.1} parent=5 // pred_check_branch
        %309 = sbr.rel (%p307) target = $region48
      $region47: #{tpu_custom_call.1} parent=5 // pred_region
        %s310 = ssub.s32 %s16, 2
        // Predicated region
        $region49: #{tpu_custom_call.1} parent=47 // pred_check
          %p311 = pneg %p113
        $region50: #{tpu_custom_call.1} parent=47 // pred_check_branch
          %313 = sbr.rel (%p311) target = $region52
        $region51: #{tpu_custom_call.1} parent=47 // pred_region
          %s314 = sand.u32 %s98, 1
          %s315 = scalar_lea.sflag [#allocation4], %s314
          %s316 = sand.u32 %s98, 1
          %s317 = smul.addr %s316, 4
          %s318 = scalar_lea.vmem [#allocation7], %s317
          %319 = dma.done %s315, 64
        $region52: #{tpu_custom_call.1} parent=47 // pred_fallthru
          _
      $region48: #{tpu_custom_call.1} parent=5 // pred_fallthru
        _
    $region6: #{tpu_custom_call.1} parent=1 // loop_footer
      %s20 = sadd.s32 1, %s16
    $region7: #{tpu_custom_call.1} parent=1 // loop_footer_branch
      %15 = sbr.rel target = $region3
    $region8: #{tpu_custom_call.1} parent=1 // loop_exit
      _
    %320 = vsyncpa [#allocation3], 1
    %s321 = scalar_lea.sflag [#allocation3], 1
    %322 = vsyncpa %s321, 1
    %323 = vsyncpa [#allocation6], 1
    %324 = vsyncpa [#allocation4], 1
    %s325 = scalar_lea.sflag [#allocation4], 1
    %326 = vsyncpa %s325, 1

</llo_original>
